<compile_context>
chip_gen: v5e
topology: v5e:2x2
jax: 0.10.0
libtpu: 0.0.40
codegen_flags: <defaults>
</compile_context>

<pallas_src>
import functools

import jax
import jax.numpy as jnp
from jax import lax
from jax.experimental import pallas as pl
from jax.experimental.pallas import tpu as pltpu

EPS = 1e-12


# --------------------------------------------------------------------------
# tile pickers (exact divisors only, to keep BlockSpecs simple & legal)
# --------------------------------------------------------------------------
def _leading_tile(n, candidates=(512, 256, 128, 64, 32, 16, 8, 4, 2, 1)):
    # tile along a leading (non-layout) axis: any divisor is legal
    for t in candidates:
        if t <= n and n % t == 0:
            return t
    return n


def _lane_tile(n, candidates=(2048, 1024, 512, 256, 128)):
    # tile along the lane (last) axis: must be a multiple of 128 or the full dim
    for t in candidates:
        if t <= n and n % t == 0:
            return t
    return n


# --------------------------------------------------------------------------
# Kernel 1: channel-wise normalization over dim=1 of (B, C, T), tiled over T
# --------------------------------------------------------------------------
def cln_kernel(x_ref, gamma_ref, beta_ref, o_ref):
    x = x_ref[...]                                        # (B, C, tT) f32
    mean = jnp.mean(x, axis=1, keepdims=True)             # (B, 1, tT)
    var = jnp.mean(x * x, axis=1, keepdims=True) - mean * mean
    var = jnp.maximum(var, 0.0)                           # guard cancellation -> NaN
    inv_std = pl.reciprocal(jnp.sqrt(var) + EPS, approx=False)
    o_ref[...] = gamma_ref[...] * (x - mean) * inv_std + beta_ref[...]


def channel_norm(x, gamma, beta):
    B, C, T = x.shape
    tT = _lane_tile(T)
    return pl.pallas_call(
        cln_kernel,
        out_shape=jax.ShapeDtypeStruct((B, C, T), jnp.float32),
        grid_spec=pltpu.PrefetchScalarGridSpec(
            num_scalar_prefetch=0,
            grid=(T // tT,),
            in_specs=[pl.BlockSpec((B, C, tT), lambda i: (0, 0, i)),
                      pl.BlockSpec((1, C, 1), lambda i: (0, 0, 0)),
                      pl.BlockSpec((1, C, 1), lambda i: (0, 0, 0))],
            out_specs=pl.BlockSpec((B, C, tT), lambda i: (0, 0, i))),
        compiler_params=pltpu.CompilerParams(dimension_semantics=("parallel",)),
    )(x, gamma, beta)


# --------------------------------------------------------------------------
# Kernel 2: hoisted LSTM input projection for BOTH directions, tiled over T
#   inputs : 1 or 2 activation parts (T, B, Din_p), weights (Din_p, 8H) bf16, bias (1,8H)
#   outputs: gates_x forward (T, B, 4H) f32, gates_x backward (T, B, 4H) f32
# --------------------------------------------------------------------------
def _inproj_body(x_vals, w_refs, b_ref, of_ref, ob_ref):
    tT, B = x_vals[0].shape[0], x_vals[0].shape[1]
    G4 = of_ref.shape[-1]                                 # 4H
    total = None
    for xv, w_ref in zip(x_vals, w_refs):
        xp = xv.reshape(tT * B, xv.shape[-1]).astype(jnp.bfloat16)
        part = jnp.dot(xp, w_ref[...], preferred_element_type=jnp.float32)
        total = part if total is None else total + part
    total = total + b_ref[...]                            # bias folded in here (not per step)
    of_ref[...] = total[:, :G4].reshape(tT, B, G4)
    ob_ref[...] = total[:, G4:].reshape(tT, B, G4)


def inproj1_kernel(x_ref, w_ref, b_ref, of_ref, ob_ref):
    _inproj_body([x_ref[...]], [w_ref], b_ref, of_ref, ob_ref)


def inproj2_kernel(xf_ref, xb_ref, wf_ref, wb_ref, b_ref, of_ref, ob_ref):
    # input is the (fwd, bwd) pair of the previous layer; splitting W_ih by input half
    # is mathematically identical to concat(fwd, bwd) @ W_ih, with no HBM concat.
    _inproj_body([xf_ref[...], xb_ref[...]], [wf_ref, wb_ref], b_ref, of_ref, ob_ref)


def input_projection(x_parts, w_parts, b):
    T, B = x_parts[0].shape[0], x_parts[0].shape[1]
    G = w_parts[0].shape[1]                               # 8H
    G4 = G // 2
    tT = _leading_tile(T)
    kern = inproj1_kernel if len(x_parts) == 1 else inproj2_kernel
    x_specs = [pl.BlockSpec((tT, B, xp.shape[2]), lambda i: (i, 0, 0)) for xp in x_parts]
    w_specs = [pl.BlockSpec(wp.shape, lambda i: (0, 0)) for wp in w_parts]
    b_spec = pl.BlockSpec(b.shape, lambda i: (0, 0))
    return pl.pallas_call(
        kern,
        out_shape=(jax.ShapeDtypeStruct((T, B, G4), jnp.float32),
                   jax.ShapeDtypeStruct((T, B, G4), jnp.float32)),
        grid_spec=pltpu.PrefetchScalarGridSpec(
            num_scalar_prefetch=0,
            grid=(T // tT,),
            in_specs=x_specs + w_specs + [b_spec],
            out_specs=(pl.BlockSpec((tT, B, G4), lambda i: (i, 0, 0)),
                       pl.BlockSpec((tT, B, G4), lambda i: (i, 0, 0)))),
        compiler_params=pltpu.CompilerParams(dimension_semantics=("parallel",)),
    )(*x_parts, *w_parts, b)


# --------------------------------------------------------------------------
# Kernel 3: fused bidirectional LSTM recurrence (PyTorch gate order i, f, g, o)
#   gx_f/gx_b: precomputed x@W_ih + b per direction, (T, B, 4H) f32
#   whh_f/whh_b: (H, 4H) bf16
#   outputs: out_f, out_b (T, B, H) f32   (direction halves kept separate; no concat)
# --------------------------------------------------------------------------
def bilstm_kernel(gxf_ref, gxb_ref, whhf_ref, whhb_ref, of_ref, ob_ref,
                  hf, cf, hb, cb):
    T = gxf_ref.shape[0]
    H = whhf_ref.shape[0]
    hf[...] = jnp.zeros_like(hf)
    cf[...] = jnp.zeros_like(cf)
    hb[...] = jnp.zeros_like(hb)
    cb[...] = jnp.zeros_like(cb)

    def cell(gx_t, h_ref, c_ref, whh_ref):
        # serial critical path: one small bf16 matmul + gate elementwise math (f32)
        g = gx_t + jnp.dot(h_ref[...].astype(jnp.bfloat16), whh_ref[...],
                           preferred_element_type=jnp.float32)       # (B, 4H) f32
        # NOTE: gate slices are lane-aligned whenever H is a multiple of 128
        # (production TasNet hidden sizes); sub-128 H only occurs in tiny tests.
        i = jax.nn.sigmoid(g[:, 0 * H:1 * H])
        f = jax.nn.sigmoid(g[:, 1 * H:2 * H])
        gg = jnp.tanh(g[:, 2 * H:3 * H])
        o = jax.nn.sigmoid(g[:, 3 * H:4 * H])
        c_new = f * c_ref[...] + i * gg
        h_new = o * jnp.tanh(c_new)
        c_ref[...] = c_new
        h_ref[...] = h_new
        return h_new

    def step(t, carry):
        of_ref[t] = cell(gxf_ref[t], hf, cf, whhf_ref)        # forward, time t
        tb = T - 1 - t
        ob_ref[tb] = cell(gxb_ref[tb], hb, cb, whhb_ref)      # backward, time T-1-t
        return carry

    lax.fori_loop(0, T, step, 0)


def bilstm_recurrence(gx_f, gx_b, whh_f, whh_b):
    T, B, _ = gx_f.shape
    H = whh_f.shape[0]
    return pl.pallas_call(
        bilstm_kernel,
        out_shape=(jax.ShapeDtypeStruct((T, B, H), jnp.float32),
                   jax.ShapeDtypeStruct((T, B, H), jnp.float32)),
        scratch_shapes=[pltpu.VMEM((B, H), jnp.float32),   # h fwd
                        pltpu.VMEM((B, H), jnp.float32),   # c fwd
                        pltpu.VMEM((B, H), jnp.float32),   # h bwd
                        pltpu.VMEM((B, H), jnp.float32)],  # c bwd
    )(gx_f, gx_b, whh_f, whh_b)


# --------------------------------------------------------------------------
# Kernel 4: final Linear(2H -> S*N) + softmax over sources, tiled over T
#   consumes the (fwd, bwd) skip halves in their native (T, B, H) layout,
#   emits lane-dense (T, B, S*N) masks (full-width store per tile).
# --------------------------------------------------------------------------
def fc_softmax_kernel(xf_ref, xb_ref, wf_ref, wb_ref, b_ref, o_ref, *,
                      n_sources, n_basis):
    tT, B, H = xf_ref.shape
    S, N = n_sources, n_basis
    xf = xf_ref[...].reshape(tT * B, H).astype(jnp.bfloat16)
    xb = xb_ref[...].reshape(tT * B, H).astype(jnp.bfloat16)
    logits = (jnp.dot(xf, wf_ref[...], preferred_element_type=jnp.float32)
              + jnp.dot(xb, wb_ref[...], preferred_element_type=jnp.float32)
              + b_ref[...])                                   # (tT*B, S*N)
    per = [logits[:, s * N:(s + 1) * N] for s in range(S)]
    m = per[0]
    for p in per[1:]:
        m = jnp.maximum(m, p)
    es = [jnp.exp(p - m) for p in per]
    denom = es[0]
    for e in es[1:]:
        denom = denom + e
    inv = pl.reciprocal(denom, approx=False)
    masks = jnp.concatenate([e * inv for e in es], axis=-1)   # (tT*B, S*N)
    o_ref[...] = masks.reshape(tT, B, S * N)


def fc_softmax(skip_f, skip_b, w_parts, b, n_sources, n_basis):
    T, B, H = skip_f.shape
    SN = n_sources * n_basis
    tT = _leading_tile(T)
    return pl.pallas_call(
        functools.partial(fc_softmax_kernel, n_sources=n_sources, n_basis=n_basis),
        out_shape=jax.ShapeDtypeStruct((T, B, SN), jnp.float32),
        grid_spec=pltpu.PrefetchScalarGridSpec(
            num_scalar_prefetch=0,
            grid=(T // tT,),
            in_specs=[pl.BlockSpec((tT, B, H), lambda i: (i, 0, 0)),
                      pl.BlockSpec((tT, B, H), lambda i: (i, 0, 0)),
                      pl.BlockSpec((H, SN), lambda i: (0, 0)),
                      pl.BlockSpec((H, SN), lambda i: (0, 0)),
                      pl.BlockSpec((1, SN), lambda i: (0, 0))],
            out_specs=pl.BlockSpec((tT, B, SN), lambda i: (i, 0, 0))),
        compiler_params=pltpu.CompilerParams(dimension_semantics=("parallel",)),
    )(skip_f, skip_b, w_parts[0], w_parts[1], b)


# --------------------------------------------------------------------------
# Parameter initialization (deterministic, synthetic; bf16 matmul weights)
# --------------------------------------------------------------------------
def init_params(key, n_basis, num_blocks, num_layers, hidden, n_sources):
    params = {
        "gamma": jnp.ones((1, n_basis, 1), jnp.float32),   # _reset_parameters: fill_(1)
        "beta": jnp.zeros((1, n_basis, 1), jnp.float32),   # _reset_parameters: zero_()
    }
    rnn = []
    for blk in range(num_blocks):
        layers = []
        for layer in range(num_layers):
            first = (blk == 0 and layer == 0)
            part_dims = (n_basis,) if first else (hidden, hidden)   # input split per direction
            wih_parts = []
            for d in part_dims:
                key, k = jax.random.split(key)
                wih_parts.append(
                    (0.1 * jax.random.normal(k, (d, 8 * hidden), jnp.float32)).astype(jnp.bfloat16))
            key, kb, kf, kbw = jax.random.split(key, 4)
            layers.append({
                "wih_parts": tuple(wih_parts),                               # (Din_p, 8H) bf16
                "b": 0.1 * jax.random.normal(kb, (1, 8 * hidden), jnp.float32),  # b_ih + b_hh, both dirs
                "whh_f": (0.1 * jax.random.normal(kf, (hidden, 4 * hidden), jnp.float32)).astype(jnp.bfloat16),
                "whh_b": (0.1 * jax.random.normal(kbw, (hidden, 4 * hidden), jnp.float32)).astype(jnp.bfloat16),
            })
        rnn.append(layers)
    params["rnn"] = rnn
    key, k1, k2, k3 = jax.random.split(key, 4)
    SN = n_sources * n_basis
    params["fc_w_parts"] = (
        (0.1 * jax.random.normal(k1, (hidden, SN), jnp.float32)).astype(jnp.bfloat16),
        (0.1 * jax.random.normal(k2, (hidden, SN), jnp.float32)).astype(jnp.bfloat16),
    )
    params["fc_b"] = 0.1 * jax.random.normal(k3, (1, SN), jnp.float32)
    return params


# --------------------------------------------------------------------------
# Separator forward
# --------------------------------------------------------------------------
def separator_forward(params, x, *, num_blocks, num_layers, hidden, n_sources, n_basis):
    B, C, T = x.shape
    assert C == n_basis

    # 1) channel norm (Pallas, tiled over frames)
    xn = channel_norm(x, params["gamma"], params["beta"])          # (B, C, T)

    # 2) PyTorch permutes to batch_first; we use time-major (T, B, C) for the recurrence
    cur = (jnp.transpose(xn, (2, 0, 1)),)                          # single-part input

    skip_f = None
    skip_b = None
    for blk in range(num_blocks):
        for layer in range(num_layers):
            p = params["rnn"][blk][layer]
            gx_f, gx_b = input_projection(cur, p["wih_parts"], p["b"])     # hoisted x@Wih (+b)
            out_f, out_b = bilstm_recurrence(gx_f, gx_b, p["whh_f"], p["whh_b"])
            cur = (out_f, out_b)
        skip_f = out_f if skip_f is None else skip_f + out_f       # skip = x + skip
        skip_b = out_b if skip_b is None else skip_b + out_b

    # 3) fc + softmax over sources (Pallas, tiled over frames, lane-dense output)
    masks = fc_softmax(skip_f, skip_b, params["fc_w_parts"], params["fc_b"],
                       n_sources, n_basis)                         # (T, B, S*N)

    out = masks.reshape(T, B, n_sources, n_basis)                  # (T, B, S, N)
    out = jnp.transpose(out, (1, 2, 3, 0))                         # (B, S, N, T)
    return out


if __name__ == "__main__":
    # small, module-consistent shapes
    batch = 2
    n_basis = 16
    n_frames = 8
    hidden_channels = 32
    num_blocks = 2
    num_layers = 2
    n_sources = 2

    key = jax.random.PRNGKey(0)
    kx, kp = jax.random.split(key)
    x = jax.random.normal(kx, (batch, n_basis, n_frames), jnp.float32)
    params = init_params(kp, n_basis, num_blocks, num_layers, hidden_channels, n_sources)

    out = separator_forward(
        params, x,
        num_blocks=num_blocks, num_layers=num_layers,
        hidden=hidden_channels, n_sources=n_sources, n_basis=n_basis,
    )
    out = jax.block_until_ready(out)

    assert out.shape == (batch, n_sources, n_basis, n_frames)
    # softmax over the source dimension must sum to 1
    sums = jnp.sum(out, axis=1)
    assert bool(jnp.allclose(sums, jnp.ones_like(sums), atol=1e-5))
    print("KERNEL_OK")
</pallas_src>

<mosaic_0001>
module attributes {stable_mosaic.version = 11 : i64} {
  func.func @cln_kernel(%arg0: i32, %arg1: memref<2x16x8xf32, #tpu.memory_space<vmem>>, %arg2: memref<1x16x1xf32, #tpu.memory_space<vmem>>, %arg3: memref<1x16x1xf32, #tpu.memory_space<vmem>>, %arg4: memref<2x16x8xf32, #tpu.memory_space<vmem>>) attributes {dimension_semantics = [#tpu.dimension_semantics<parallel>], iteration_bounds = array<i64: 1>, scalar_prefetch = 0 : i64, scratch_operands = 0 : i64, tpu.core_type = #tpu.core_type<tc>, window_params = [{transform_indices = @transform_0, window_bounds = array<i64: 2, 16, 8>}, {pipeline_mode = #tpu.pipeline_mode<synchronous>, transform_indices = @transform_1, window_bounds = array<i64: 1, 16, 1>}, {pipeline_mode = #tpu.pipeline_mode<synchronous>, transform_indices = @transform_2, window_bounds = array<i64: 1, 16, 1>}, {transform_indices = @transform_3, window_bounds = array<i64: 2, 16, 8>}]} {
    %c0 = arith.constant 0 : index
    %c0_0 = arith.constant 0 : index
    %c0_1 = arith.constant 0 : index
    %0 = vector.load %arg1[%c0, %c0_0, %c0_1] : memref<2x16x8xf32, #tpu.memory_space<vmem>>, vector<2x16x8xf32>
    %cst = arith.constant dense<0.000000e+00> : vector<2x8xf32>
    %1 = vector.multi_reduction <add>, %0, %cst [1] : vector<2x16x8xf32> to vector<2x8xf32>
    %2 = vector.shape_cast %1 : vector<2x8xf32> to vector<2x1x8xf32>
    %cst_2 = arith.constant 1.600000e+01 : f32
    %3 = vector.broadcast %cst_2 : f32 to vector<2x1x8xf32>
    %4 = arith.divf %2, %3 : vector<2x1x8xf32>
    %5 = arith.mulf %0, %0 : vector<2x16x8xf32>
    %cst_3 = arith.constant dense<0.000000e+00> : vector<2x8xf32>
    %6 = vector.multi_reduction <add>, %5, %cst_3 [1] : vector<2x16x8xf32> to vector<2x8xf32>
    %7 = vector.shape_cast %6 : vector<2x8xf32> to vector<2x1x8xf32>
    %cst_4 = arith.constant 1.600000e+01 : f32
    %8 = vector.broadcast %cst_4 : f32 to vector<2x1x8xf32>
    %9 = arith.divf %7, %8 : vector<2x1x8xf32>
    %10 = arith.mulf %4, %4 : vector<2x1x8xf32>
    %11 = arith.subf %9, %10 : vector<2x1x8xf32>
    %cst_5 = arith.constant 0.000000e+00 : f32
    %12 = vector.broadcast %cst_5 : f32 to vector<2x1x8xf32>
    %13 = arith.maximumf %11, %12 : vector<2x1x8xf32>
    %14 = math.sqrt %13 : vector<2x1x8xf32>
    %cst_6 = arith.constant 9.99999996E-13 : f32
    %15 = vector.broadcast %cst_6 : f32 to vector<2x1x8xf32>
    %16 = arith.addf %14, %15 : vector<2x1x8xf32>
    %17 = tpu.reciprocal %16 : vector<2x1x8xf32> -> vector<2x1x8xf32>
    %c0_7 = arith.constant 0 : index
    %c0_8 = arith.constant 0 : index
    %c0_9 = arith.constant 0 : index
    %18 = vector.load %arg2[%c0_7, %c0_8, %c0_9] : memref<1x16x1xf32, #tpu.memory_space<vmem>>, vector<1x16x1xf32>
    %19 = vector.broadcast %4 : vector<2x1x8xf32> to vector<2x16x8xf32>
    %20 = arith.subf %0, %19 : vector<2x16x8xf32>
    %21 = vector.broadcast %18 : vector<1x16x1xf32> to vector<2x16x8xf32>
    %22 = arith.mulf %21, %20 : vector<2x16x8xf32>
    %23 = vector.broadcast %17 : vector<2x1x8xf32> to vector<2x16x8xf32>
    %24 = arith.mulf %22, %23 : vector<2x16x8xf32>
    %c0_10 = arith.constant 0 : index
    %c0_11 = arith.constant 0 : index
    %c0_12 = arith.constant 0 : index
    %25 = vector.load %arg3[%c0_10, %c0_11, %c0_12] : memref<1x16x1xf32, #tpu.memory_space<vmem>>, vector<1x16x1xf32>
    %26 = vector.broadcast %25 : vector<1x16x1xf32> to vector<2x16x8xf32>
    %27 = arith.addf %24, %26 : vector<2x16x8xf32>
    %c0_13 = arith.constant 0 : index
    %c0_14 = arith.constant 0 : index
    %c0_15 = arith.constant 0 : index
    %28 = vector.load %arg4[%c0_13, %c0_14, %c0_15] : memref<2x16x8xf32, #tpu.memory_space<vmem>>, vector<2x16x8xf32>
    tpu.vector_store %arg4[%c0_13, %c0_14, %c0_15], %27 {strides = array<i32>} : memref<2x16x8xf32, #tpu.memory_space<vmem>>, vector<2x16x8xf32>,
    return
  }
  func.func @transform_0(%arg0: i32) -> (i32, i32, i32) {
    %c0_i32 = arith.constant 0 : i32
    %c0_i32_0 = arith.constant 0 : i32
    %c0_i32_1 = arith.constant 0 : i32
    return %c0_i32, %c0_i32_0, %arg0 : i32, i32, i32
  }
  func.func @transform_1(%arg0: i32) -> (i32, i32, i32) {
    %c0_i32 = arith.constant 0 : i32
    %c0_i32_0 = arith.constant 0 : i32
    %c0_i32_1 = arith.constant 0 : i32
    %c0_i32_2 = arith.constant 0 : i32
    return %c0_i32, %c0_i32_0, %c0_i32_1 : i32, i32, i32
  }
  func.func @transform_2(%arg0: i32) -> (i32, i32, i32) {
    %c0_i32 = arith.constant 0 : i32
    %c0_i32_0 = arith.constant 0 : i32
    %c0_i32_1 = arith.constant 0 : i32
    %c0_i32_2 = arith.constant 0 : i32
    return %c0_i32, %c0_i32_0, %c0_i32_1 : i32, i32, i32
  }
  func.func @transform_3(%arg0: i32) -> (i32, i32, i32) {
    %c0_i32 = arith.constant 0 : i32
    %c0_i32_0 = arith.constant 0 : i32
    %c0_i32_1 = arith.constant 0 : i32
    return %c0_i32, %c0_i32_0, %arg0 : i32, i32, i32
  }
}

</mosaic_0001>

<llo_original>
// kernel: tpu_custom_call.1
$region0: #{tpu_custom_call.1}
  #allocation0 [shape = 'u32[]', space=smem, size = 0x4, offset = 0x4, fixed_abs, tag = 'smem constant byte address 0x4 - core index']
  #allocation1 [shape = 'u32[72,128]{1,0:T(1,128)}', space=vmem, size = 0x9000, scoped, tag = 'internal scratch']
  %s0 = inlined_call_operand.vmem [shape: f32[2,16,8], index: 0, kind: input, shape index: {}]
  %s1 = inlined_call_operand.vmem [shape: f32[1,16,1], index: 1, kind: input, shape index: {}]
  %s2 = inlined_call_operand.vmem [shape: f32[1,16,1], index: 2, kind: input, shape index: {}]
  %s3 = inlined_call_operand.vmem [shape: f32[2,16,8], index: 3, kind: output, shape index: {}]
  %s4 = sld [smem:[#allocation0]]
  $region22: #{tpu_custom_call.1} parent=0
    _
  %s6 = ssub.s32 1, %s4
  %s7 = scalar_select 0, %s6, %s4
  // Predicated region
  $region2: #{tpu_custom_call.1} parent=0 // pred_check
    _
  $region3: #{tpu_custom_call.1} parent=0 // pred_check_branch
    %9 = sbr.rel (0) target = $region5
  $region4: #{tpu_custom_call.1} parent=0 // pred_region
    _
  $region5: #{tpu_custom_call.1} parent=0 // pred_fallthru
    _
  // Predicated region
  $region6: #{tpu_custom_call.1} parent=0 // pred_check
    _
  $region7: #{tpu_custom_call.1} parent=0 // pred_check_branch
    %11 = sbr.rel (0) target = $region9
  $region8: #{tpu_custom_call.1} parent=0 // pred_region
    _
  $region9: #{tpu_custom_call.1} parent=0 // pred_fallthru
    _
  // Predicated region
  $region10: #{tpu_custom_call.1} parent=0 // pred_check
    _
  $region11: #{tpu_custom_call.1} parent=0 // pred_check_branch
    %13 = sbr.rel (0) target = $region13
  $region12: #{tpu_custom_call.1} parent=0 // pred_region
    _
  $region13: #{tpu_custom_call.1} parent=0 // pred_fallthru
    _
  %v14 = vld [vmem:[%s0] sm:$0xff]
  %v15 = vld [vmem:[%s0 + $0x8] sm:$0xff]
  %v16 = vld [vmem:[%s0 + $0x10] sm:$0xff]
  %v17 = vld [vmem:[%s0 + $0x18] sm:$0xff]
  %vm18 = vcmask 64512
  %v19 = vsel %vm18, %v14, 0.0
  %v20 = vsel %vm18, %v15, 0.0
  %v21 = vadd.f32 %v19, %v20
  %v22 = vrot.slane %v21, 4
  %v23 = vadd.f32 %v21, %v22
  %v24 = vrot.slane %v23, 2
  %v25 = vadd.f32 %v23, %v24
  %v26 = vrot.slane %v25, 1
  %v27 = vadd.f32 %v25, %v26
  %v28 = vsel %vm18, %v16, 0.0
  %v29 = vsel %vm18, %v17, 0.0
  %v30 = vadd.f32 %v28, %v29
  %v31 = vrot.slane %v30, 4
  %v32 = vadd.f32 %v30, %v31
  %v33 = vrot.slane %v32, 2
  %v34 = vadd.f32 %v32, %v33
  %v35 = vrot.slane %v34, 1
  %v36 = vadd.f32 %v34, %v35
  %v37 = vrcp.pop 16.0
  %v38 = vmul.f32 16.0, %v37
  %v39 = vsub.f32 1.0, %v38
  %v40 = vmul.f32 %v37, %v39
  %v41 = vadd.f32 %v37, %v40
  %vm42 = vweird.f32 %v37
  %v43 = vsel %vm42, %v37, %v41
  %v44 = vmul.f32 %v27, %v43
  %v45 = vmul.f32 %v36, %v43
  %v46 = vmul.f32 %v14, %v14
  %v47 = vmul.f32 %v15, %v15
  %v48 = vmul.f32 %v16, %v16
  %v49 = vmul.f32 %v17, %v17
  %v50 = vsel %vm18, %v46, 0.0
  %v51 = vsel %vm18, %v47, 0.0
  %v52 = vadd.f32 %v50, %v51
  %v53 = vrot.slane %v52, 4
  %v54 = vadd.f32 %v52, %v53
  %v55 = vrot.slane %v54, 2
  %v56 = vadd.f32 %v54, %v55
  %v57 = vrot.slane %v56, 1
  %v58 = vadd.f32 %v56, %v57
  %v59 = vsel %vm18, %v48, 0.0
  %v60 = vsel %vm18, %v49, 0.0
  %v61 = vadd.f32 %v59, %v60
  %v62 = vrot.slane %v61, 4
  %v63 = vadd.f32 %v61, %v62
  %v64 = vrot.slane %v63, 2
  %v65 = vadd.f32 %v63, %v64
  %v66 = vrot.slane %v65, 1
  %v67 = vadd.f32 %v65, %v66
  %v68 = vmul.f32 %v58, %v43
  %v69 = vmul.f32 %v67, %v43
  %v70 = vmul.f32 %v44, %v44
  %v71 = vmul.f32 %v45, %v45
  %v72 = vsub.f32 %v68, %v70
  %v73 = vsub.f32 %v69, %v71
  %v74 = vmax.f32 %v72, 0.0
  %v75 = vmax.f32 %v73, 0.0
  %v76 = vrsqrt.pop %v74
  %v77 = vmul.f32 %v76, %v74
  %v78 = vmul.f32 %v77, %v76
  %v79 = vmul.f32 0.5, %v78
  %v80 = vsub.f32 1.5, %v79
  %v81 = vmul.f32 %v76, %v80
  %v82 = vmul.f32 %v74, %v81
  %vm83 = vcmp.eq.f32.partialorder %v74, inf
  %v84 = vsel %vm83, %v74, %v82
  %vm85 = vcmp.eq.f32.partialorder %v74, 0.0
  %v86 = vand.u32 %v74, 2147483648
  %v87 = vsel %vm85, %v86, %v84
  %v88 = vrsqrt.pop %v75
  %v89 = vmul.f32 %v88, %v75
  %v90 = vmul.f32 %v89, %v88
  %v91 = vmul.f32 0.5, %v90
  %v92 = vsub.f32 1.5, %v91
  %v93 = vmul.f32 %v88, %v92
  %v94 = vmul.f32 %v75, %v93
  %vm95 = vcmp.eq.f32.partialorder %v75, inf
  %v96 = vsel %vm95, %v75, %v94
  %vm97 = vcmp.eq.f32.partialorder %v75, 0.0
  %v98 = vand.u32 %v75, 2147483648
  %v99 = vsel %vm97, %v98, %v96
  %v100 = vadd.f32 %v87, 1e-12
  %v101 = vadd.f32 %v99, 1e-12
  %v102 = vrcp.pop %v100
  %v103 = vmul.f32 %v100, %v102
  %v104 = vsub.f32 1.0, %v103
  %v105 = vmul.f32 %v102, %v104
  %v106 = vadd.f32 %v102, %v105
  %vm107 = vweird.f32 %v100
  %vm108 = vweird.f32 %v102
  %vm109 = vmor %vm107, %vm108
  %v110 = vsel %vm109, %v102, %v106
  %v111 = vand.u32 2147483647, %v100
  %vm112 = vcmp.eq.f32.partialorder %v111, 8.507059e+37
  %v113 = vand.u32 %v100, 2147483648
  %v114 = vor.u32 1.1754944e-38, %v113
  %v115 = vsel %vm112, %v114, %v110
  %v116 = vrcp.pop %v101
  %v117 = vmul.f32 %v101, %v116
  %v118 = vsub.f32 1.0, %v117
  %v119 = vmul.f32 %v116, %v118
  %v120 = vadd.f32 %v116, %v119
  %vm121 = vweird.f32 %v101
  %vm122 = vweird.f32 %v116
  %vm123 = vmor %vm121, %vm122
  %v124 = vsel %vm123, %v116, %v120
  %v125 = vand.u32 2147483647, %v101
  %vm126 = vcmp.eq.f32.partialorder %v125, 8.507059e+37
  %v127 = vand.u32 %v101, 2147483648
  %v128 = vor.u32 1.1754944e-38, %v127
  %v129 = vsel %vm126, %v128, %v124
  %v130 = vld [vmem:[%s1] sm:$0xff]
  %v131 = vld [vmem:[%s1 + $0x8] sm:$0xff]
  %v132 = vsub.f32 %v14, %v44
  %v133 = vsub.f32 %v15, %v44
  %v134 = vsub.f32 %v16, %v45
  %v135 = vsub.f32 %v17, %v45
  %137 = vset.pattern.permute.xlu0 0
  %138 = vperm.xlu0 %137, %v130
  %v139 = vpop.permute.xlu0 %138
  %142 = vset.pattern.permute.xlu0 0
  %143 = vperm.xlu0 %142, %v131
  %v144 = vpop.permute.xlu0 %143
  %v146 = vmul.f32 %v139, %v132
  %v147 = vmul.f32 %v144, %v133
  %v148 = vmul.f32 %v139, %v134
  %v149 = vmul.f32 %v144, %v135
  %v150 = vmul.f32 %v146, %v115
  %v151 = vmul.f32 %v147, %v115
  %v152 = vmul.f32 %v148, %v129
  %v153 = vmul.f32 %v149, %v129
  %v154 = vld [vmem:[%s2] sm:$0xff]
  %v155 = vld [vmem:[%s2 + $0x8] sm:$0xff]
  %157 = vset.pattern.permute.xlu0 0
  %158 = vperm.xlu0 %157, %v154
  %v159 = vpop.permute.xlu0 %158
  %162 = vset.pattern.permute.xlu0 0
  %163 = vperm.xlu0 %162, %v155
  %v164 = vpop.permute.xlu0 %163
  %v166 = vadd.f32 %v150, %v159
  %v167 = vadd.f32 %v151, %v164
  %v168 = vadd.f32 %v152, %v159
  %v169 = vadd.f32 %v153, %v164
  %170 = vst.msk [vmem:[%s3] sm:$0xff] %vm18, %v166
  %171 = vst.msk [vmem:[%s3 + $0x8] sm:$0xff] %vm18, %v167
  %172 = vst.msk [vmem:[%s3 + $0x10] sm:$0xff] %vm18, %v168
  %173 = vst.msk [vmem:[%s3 + $0x18] sm:$0xff] %vm18, %v169
  // Predicated region
  $region14: #{tpu_custom_call.1} parent=0 // pred_check
    _
  $region15: #{tpu_custom_call.1} parent=0 // pred_check_branch
    %175 = sbr.rel (0) target = $region17
  $region16: #{tpu_custom_call.1} parent=0 // pred_region
    _
  $region17: #{tpu_custom_call.1} parent=0 // pred_fallthru
    _
  // Predicated region
  $region18: #{tpu_custom_call.1} parent=0 // pred_check
    _
  $region19: #{tpu_custom_call.1} parent=0 // pred_check_branch
    %177 = sbr.rel (0) target = $region21
  $region20: #{tpu_custom_call.1} parent=0 // pred_region
    _
  $region21: #{tpu_custom_call.1} parent=0 // pred_fallthru
    _

</llo_original>
